<compile_context>
chip_gen: v7x
topology: tpu7x:2x2x1
jax: 0.10.0
libtpu: 0.0.40
codegen_flags: <defaults>
</compile_context>

<pallas_src>
import functools

import jax
import jax.numpy as jnp
from jax.experimental import pallas as pl
from jax.experimental.pallas import tpu as pltpu


# ----------------------------- in-kernel helpers -----------------------------

def _smooth_l1_sum(x, t, w, sigma):
    """Sum of smooth-L1 elements; mirrors torch _smooth_l1_loss.

    Operates vreg-for-vreg on lane-dense tiles (weights precomputed densely in
    the wrapper).  Zero-padded tail entries contribute exactly 0.
    """
    sigma2 = sigma * sigma
    diff = jnp.abs((x - t) * w)
    smooth = (diff < (1.0 / sigma2)).astype(jnp.float32)
    loss = smooth * sigma2 * diff * diff * 0.5 + (1.0 - smooth) * (diff - 0.5 / sigma2)
    return jnp.sum(loss)


def _ce_sums(scores_cn, labels_1n):
    """Cross-entropy pieces for class-major (C, N) scores with (1, N) labels.

    Returns (sum of NLL over valid rows, valid row count); ignore_index = -1.
    The class axis is unrolled into elementwise VPU ops (no XLU class reduce,
    no one-hot intermediates).
    """
    num_classes = scores_cn.shape[0]
    rows = [scores_cn[c:c + 1, :] for c in range(num_classes)]
    if num_classes == 2:
        mx = jnp.maximum(rows[0], rows[1])
        lse = mx + jnp.log(1.0 + jnp.exp(-jnp.abs(rows[0] - rows[1])))
        picked = jnp.where(labels_1n == 1, rows[1], rows[0])
    else:
        mx = rows[0]
        for r in rows[1:]:
            mx = jnp.maximum(mx, r)
        se = jnp.exp(rows[0] - mx)
        for r in rows[1:]:
            se = se + jnp.exp(r - mx)
        lse = mx + jnp.log(se)
        picked = jnp.where(labels_1n == 0, rows[0], 0.0)
        for c in range(1, num_classes):
            picked = picked + jnp.where(labels_1n == c, rows[c], 0.0)
    valid = (labels_1n != -1).astype(jnp.float32)
    return jnp.sum((lse - picked) * valid), jnp.sum(valid)


# --------------------------------- the kernel --------------------------------

def _trainer_loss_kernel(rpn_x_ref, rpn_t_ref, rpn_w_ref, rpn_sc_ref, rpn_lbl_ref,
                         roi_loc_ref, roi_gt_ref, roi_w_ref, roi_sc_ref, roi_lbl_ref,
                         out_ref,
                         *, rpn_sigma, roi_sigma, loc_loss_lambda, class_specific):
    # ---------------- RPN localization loss on lane-dense (K,128) tiles ------
    rpn_loc_sum = _smooth_l1_sum(rpn_x_ref[...], rpn_t_ref[...], rpn_w_ref[...],
                                 rpn_sigma)
    rpn_lbl = rpn_lbl_ref[...]                                   # (1, R) int32
    rpn_norm = jnp.sum((rpn_lbl >= 0).astype(jnp.float32))

    # ---------------- RPN fg/bg cross-entropy on (2, R) layout ---------------
    rpn_ce_sum, rpn_valid = _ce_sums(rpn_sc_ref[...], rpn_lbl)

    # ---------------- class-specific RoI loc pick (unrolled selects) ---------
    roi_lbl = roi_lbl_ref[...]                                   # (1, S) int32
    if class_specific:
        num_classes = roi_loc_ref.shape[0]                       # (C, 4, S)
        # Note: labels are guaranteed >= 0 (torch's fancy indexing would wrap
        # -1 to the last class; here -1 selects zeros, masked out by weight 0).
        sel = jnp.where(roi_lbl == 0, roi_loc_ref[0], 0.0)       # (4, S)
        for c in range(1, num_classes):
            sel = sel + jnp.where(roi_lbl == c, roi_loc_ref[c], 0.0)
    else:
        sel = roi_loc_ref[...]                                   # (4, S)

    # ---------------- RoI localization loss ----------------------------------
    roi_loc_sum = _smooth_l1_sum(sel, roi_gt_ref[...], roi_w_ref[...], roi_sigma)
    roi_norm = jnp.sum((roi_lbl >= 0).astype(jnp.float32))

    # ---------------- RoI classification cross-entropy on (C, S) -------------
    roi_ce_sum, roi_valid = _ce_sums(roi_sc_ref[...], roi_lbl)

    # ---------------- epilogue: scalar divides + stores in one block ---------
    rpn_loc_loss = rpn_loc_sum / rpn_norm * loc_loss_lambda
    rpn_fg_loss = rpn_ce_sum / rpn_valid
    roi_loc_loss = roi_loc_sum / roi_norm * loc_loss_lambda
    roi_cls_loss = roi_ce_sum / roi_valid
    total_loss = rpn_loc_loss + rpn_fg_loss + roi_loc_loss + roi_cls_loss

    out_ref[0] = rpn_loc_loss
    out_ref[1] = rpn_fg_loss
    out_ref[2] = roi_loc_loss
    out_ref[3] = roi_cls_loss
    out_ref[4] = total_loss


# --------------------------------- wrapper -----------------------------------

def _lane_dense(a):
    """Flatten, zero-pad to a multiple of 128 lanes, reshape to (-1, 128) f32."""
    flat = a.reshape(-1).astype(jnp.float32)
    n = flat.shape[0]
    pad = (-n) % 128
    if pad:
        flat = jnp.pad(flat, (0, pad))
    return flat.reshape(-1, 128)


@functools.partial(
    jax.jit,
    static_argnames=("rpn_sigma", "roi_sigma", "loc_loss_lambda", "class_specific"))
def trainer_forward(imgs, bboxes, labels, scale,
                    rpn_scores, rpn_locs, gt_rpn_locs, gt_rpn_labels,
                    roi_score, roi_loc, gt_roi_loc, gt_roi_label,
                    *, rpn_sigma=3.0, roi_sigma=1.0, loc_loss_lambda=1.0,
                    class_specific=True):
    """Mirrors Trainer.forward loss computation (batch size 1).

    imgs/bboxes/labels/scale match the PyTorch signature.  The remaining args
    are what rfcn.{extractor,rpn,roi_head} and the RPN/RoI target generators
    would produce (those modules were not provided).
    """
    if imgs.shape[0] != 1:
        raise ValueError("Only batch_size 1 is supported.")
    # TODO(synk): rfcn.extractor / rfcn.rpn / rfcn.roi_head and
    # RPNTargetGenerator / RoITargetGenerator are external modules that were not
    # provided; their outputs are passed in directly instead of being computed.
    # TODO(synk): ConfusionMeter / AverageValueMeter / Visualizer / optimizer /
    # train_step are host-side bookkeeping with no Pallas equivalent.

    R = rpn_locs.shape[0]
    S = gt_roi_loc.shape[0]
    C = roi_score.shape[1]

    # ---- lane-dense layout plumbing (fuses into the call; not compute) ----
    rpn_lbl_1r = gt_rpn_labels.reshape(1, R).astype(jnp.int32)            # (1, R)
    rpn_w_dense = _lane_dense(
        jnp.broadcast_to((gt_rpn_labels > 0).astype(jnp.float32)[:, None], (R, 4)))
    rpn_x_dense = _lane_dense(rpn_locs)                                   # (R*4/128, 128)
    rpn_t_dense = _lane_dense(gt_rpn_locs)
    rpn_sc_t = rpn_scores.astype(jnp.float32).T                           # (2, R)

    roi_lbl_1s = gt_roi_label.reshape(1, S).astype(jnp.int32)             # (1, S)
    if class_specific:
        roi_loc_t = roi_loc.reshape(S, -1, 4).astype(jnp.float32).transpose(1, 2, 0)  # (C,4,S)
    else:
        roi_loc_t = roi_loc.reshape(S, 4).astype(jnp.float32).T           # (4, S)
    roi_gt_t = gt_roi_loc.astype(jnp.float32).T                           # (4, S)
    roi_w = jnp.broadcast_to(
        (gt_roi_label > 0).astype(jnp.float32)[None, :], (4, S))          # (4, S)
    roi_sc_t = roi_score.astype(jnp.float32).T                            # (C, S)

    kernel = functools.partial(
        _trainer_loss_kernel,
        rpn_sigma=float(rpn_sigma),
        roi_sigma=float(roi_sigma),
        loc_loss_lambda=float(loc_loss_lambda),
        class_specific=bool(class_specific),
    )

    # Single grid point, full-array VMEM blocks: inputs total a few KiB, so any
    # extra grid steps would only add ~0.35 us/step overhead.  (For production
    # anchor counts, grid the RPN arrays over lane-dense row blocks instead.)
    out = pl.pallas_call(
        kernel,
        out_shape=jax.ShapeDtypeStruct((5,), jnp.float32),
        in_specs=[pl.BlockSpec(memory_space=pltpu.MemorySpace.VMEM)] * 10,
        out_specs=pl.BlockSpec(memory_space=pltpu.MemorySpace.SMEM),
        compiler_params=pltpu.CompilerParams(allow_input_fusion=[True] * 10),
    )(
        rpn_x_dense, rpn_t_dense, rpn_w_dense, rpn_sc_t, rpn_lbl_1r,
        roi_loc_t, roi_gt_t, roi_w, roi_sc_t, roi_lbl_1s,
    )

    return {
        "rpn_loc_loss": out[0],
        "rpn_fg_loss": out[1],
        "roi_loc_loss": out[2],
        "roi_cls_loss": out[3],
        "total_loss": out[4],
    }


# ------------------------- pure-JAX reference (check) -------------------------

def _ref_losses(rpn_scores, rpn_locs, gt_rpn_locs, gt_rpn_labels,
                roi_score, roi_loc, gt_roi_loc, gt_roi_label,
                rpn_sigma, roi_sigma, loc_loss_lambda, class_specific):
    def smooth_l1(x, t, w, sigma):
        s2 = sigma * sigma
        d = jnp.abs((x - t) * w)
        sm = (d < 1.0 / s2).astype(jnp.float32)
        return jnp.sum(sm * s2 * d * d / 2.0 + (1.0 - sm) * (d - 0.5 / s2))

    def loc_loss(locs, gt_locs, gt_labels, sigma):
        w = (gt_labels > 0).astype(jnp.float32)[:, None]
        return smooth_l1(locs, gt_locs, w, sigma) / jnp.sum(
            (gt_labels >= 0).astype(jnp.float32))

    def ce(scores, lbl, ignore_index):
        logp = jax.nn.log_softmax(scores, axis=-1)
        valid = lbl != ignore_index
        safe = jnp.where(valid, lbl, 0)
        picked = jnp.take_along_axis(logp, safe[:, None], axis=1)[:, 0]
        return -jnp.sum(picked * valid) / jnp.sum(valid.astype(jnp.float32))

    rpn_loc_loss = loc_loss(rpn_locs, gt_rpn_locs, gt_rpn_labels, rpn_sigma) * loc_loss_lambda
    rpn_fg_loss = ce(rpn_scores, gt_rpn_labels, -1)
    if class_specific:
        n = roi_loc.shape[0]
        roi_loc_sel = roi_loc[jnp.arange(n), gt_roi_label]
    else:
        roi_loc_sel = roi_loc
    roi_loc_loss = loc_loss(roi_loc_sel, gt_roi_loc, gt_roi_label, roi_sigma) * loc_loss_lambda
    roi_cls_loss = ce(roi_score, gt_roi_label, -1)
    total = rpn_loc_loss + rpn_fg_loss + roi_loc_loss + roi_cls_loss
    return jnp.stack([rpn_loc_loss, rpn_fg_loss, roi_loc_loss, roi_cls_loss, total])


# ------------------------------------ main ------------------------------------

if __name__ == "__main__":
    key = jax.random.PRNGKey(0)
    ks = jax.random.split(key, 12)

    # Small, forward-consistent shapes.
    N, C_img, H, W = 1, 3, 16, 16          # imgs (N,C,H,W), batch must be 1
    R_box = 4                               # gt boxes per image
    R = 256                                 # RPN anchors (R*4 = 1024 = one (8,128) vreg)
    S = 32                                  # sampled RoIs
    NUM_CLASSES = 4
    scale = 1.0

    imgs = jax.random.normal(ks[0], (N, C_img, H, W), jnp.float32)
    bboxes = jax.random.uniform(ks[1], (N, R_box, 4), jnp.float32) * 16.0
    box_labels = jax.random.randint(ks[2], (N, R_box), 1, NUM_CLASSES)

    # Synthetic stand-ins for rfcn.rpn / roi_head outputs and target generators.
    rpn_scores = jax.random.normal(ks[3], (R, 2), jnp.float32)
    rpn_locs = jax.random.normal(ks[4], (R, 4), jnp.float32)
    gt_rpn_locs = jax.random.normal(ks[5], (R, 4), jnp.float32)
    gt_rpn_labels = jax.random.randint(ks[6], (R,), -1, 2)      # {-1,0,1}
    gt_rpn_labels = gt_rpn_labels.at[0].set(1).at[1].set(0)     # ensure valid entries

    roi_score = jax.random.normal(ks[7], (S, NUM_CLASSES), jnp.float32)
    roi_loc = jax.random.normal(ks[8], (S, NUM_CLASSES, 4), jnp.float32)  # class-specific head
    gt_roi_loc = jax.random.normal(ks[9], (S, 4), jnp.float32)
    gt_roi_label = jax.random.randint(ks[10], (S,), 0, NUM_CLASSES)

    cfg = dict(rpn_sigma=3.0, roi_sigma=1.0, loc_loss_lambda=1.0, class_specific=True)

    losses = trainer_forward(imgs, bboxes, box_labels, scale,
                             rpn_scores, rpn_locs, gt_rpn_locs, gt_rpn_labels,
                             roi_score, roi_loc, gt_roi_loc, gt_roi_label,
                             rpn_sigma=cfg["rpn_sigma"], roi_sigma=cfg["roi_sigma"],
                             loc_loss_lambda=cfg["loc_loss_lambda"],
                             class_specific=cfg["class_specific"])
    jax.block_until_ready(losses["total_loss"])

    # Self-check against the pure-JAX reference.
    ref = _ref_losses(rpn_scores, rpn_locs, gt_rpn_locs, gt_rpn_labels,
                      roi_score, roi_loc, gt_roi_loc, gt_roi_label,
                      cfg["rpn_sigma"], cfg["roi_sigma"],
                      cfg["loc_loss_lambda"], cfg["class_specific"])
    got = jnp.stack([losses["rpn_loc_loss"], losses["rpn_fg_loss"],
                     losses["roi_loc_loss"], losses["roi_cls_loss"],
                     losses["total_loss"]])
    assert jnp.allclose(got, ref, rtol=1e-4, atol=1e-4), (got, ref)

    print("KERNEL_OK")
</pallas_src>

<mosaic_0001>
module attributes {stable_mosaic.version = 11 : i64} {
  func.func @_trainer_loss_kernel(%arg0: memref<8x128xf32, #tpu.memory_space<vmem>>, %arg1: memref<8x128xf32, #tpu.memory_space<vmem>>, %arg2: memref<8x128xf32, #tpu.memory_space<vmem>>, %arg3: memref<2x256xf32, #tpu.memory_space<vmem>>, %arg4: memref<1x256xi32, #tpu.memory_space<vmem>>, %arg5: memref<4x4x32xf32, #tpu.memory_space<vmem>>, %arg6: memref<4x32xf32, #tpu.memory_space<vmem>>, %arg7: memref<4x32xf32, #tpu.memory_space<vmem>>, %arg8: memref<4x32xf32, #tpu.memory_space<vmem>>, %arg9: memref<1x32xi32, #tpu.memory_space<vmem>>, %arg10: memref<5xf32, #tpu.memory_space<smem>>) attributes {dimension_semantics = [], scalar_prefetch = 0 : i64, scratch_operands = 0 : i64, tpu.core_type = #tpu.core_type<tc>} {
    %c0 = arith.constant 0 : index
    %c0_0 = arith.constant 0 : index
    %0 = vector.load %arg0[%c0, %c0_0] : memref<8x128xf32, #tpu.memory_space<vmem>>, vector<8x128xf32>
    %c0_1 = arith.constant 0 : index
    %c0_2 = arith.constant 0 : index
    %1 = vector.load %arg1[%c0_1, %c0_2] : memref<8x128xf32, #tpu.memory_space<vmem>>, vector<8x128xf32>
    %c0_3 = arith.constant 0 : index
    %c0_4 = arith.constant 0 : index
    %2 = vector.load %arg2[%c0_3, %c0_4] : memref<8x128xf32, #tpu.memory_space<vmem>>, vector<8x128xf32>
    %3 = arith.subf %0, %1 : vector<8x128xf32>
    %4 = arith.mulf %3, %2 : vector<8x128xf32>
    %5 = math.absf %4 : vector<8x128xf32>
    %cst = arith.constant 0.111111112 : f32
    %6 = vector.broadcast %cst : f32 to vector<8x128xf32>
    %7 = arith.cmpf olt, %5, %6 : vector<8x128xf32>
    %8 = arith.extui %7 : vector<8x128xi1> to vector<8x128xi32>
    %9 = arith.sitofp %8 : vector<8x128xi32> to vector<8x128xf32>
    %cst_5 = arith.constant 9.000000e+00 : f32
    %10 = vector.broadcast %cst_5 : f32 to vector<8x128xf32>
    %11 = arith.mulf %9, %10 : vector<8x128xf32>
    %12 = arith.mulf %11, %5 : vector<8x128xf32>
    %13 = arith.mulf %12, %5 : vector<8x128xf32>
    %cst_6 = arith.constant 5.000000e-01 : f32
    %14 = vector.broadcast %cst_6 : f32 to vector<8x128xf32>
    %15 = arith.mulf %13, %14 : vector<8x128xf32>
    %cst_7 = arith.constant 1.000000e+00 : f32
    %16 = vector.broadcast %cst_7 : f32 to vector<8x128xf32>
    %17 = arith.subf %16, %9 : vector<8x128xf32>
    %cst_8 = arith.constant 0.055555556 : f32
    %18 = vector.broadcast %cst_8 : f32 to vector<8x128xf32>
    %19 = arith.subf %5, %18 : vector<8x128xf32>
    %20 = arith.mulf %17, %19 : vector<8x128xf32>
    %21 = arith.addf %15, %20 : vector<8x128xf32>
    %22 = vector.shape_cast %21 : vector<8x128xf32> to vector<1x8x128xf32>
    %cst_9 = arith.constant dense<0.000000e+00> : vector<1xf32>
    %23 = vector.multi_reduction <add>, %22, %cst_9 [1, 2] : vector<1x8x128xf32> to vector<1xf32>
    %24 = vector.shape_cast %23 : vector<1xf32> to vector<1x1x1xf32>
    %25 = vector.extract %24[0, 0, 0] : f32 from vector<1x1x1xf32>
    %c0_10 = arith.constant 0 : index
    %c0_11 = arith.constant 0 : index
    %26 = vector.load %arg4[%c0_10, %c0_11] : memref<1x256xi32, #tpu.memory_space<vmem>>, vector<1x256xi32>
    %c0_i32 = arith.constant 0 : i32
    %27 = vector.broadcast %c0_i32 : i32 to vector<1x256xi32>
    %28 = arith.cmpi sge, %26, %27 : vector<1x256xi32>
    %29 = arith.extui %28 : vector<1x256xi1> to vector<1x256xi32>
    %30 = arith.sitofp %29 : vector<1x256xi32> to vector<1x256xf32>
    %31 = vector.shape_cast %30 : vector<1x256xf32> to vector<1x1x256xf32>
    %cst_12 = arith.constant dense<0.000000e+00> : vector<1xf32>
    %32 = vector.multi_reduction <add>, %31, %cst_12 [1, 2] : vector<1x1x256xf32> to vector<1xf32>
    %33 = vector.shape_cast %32 : vector<1xf32> to vector<1x1x1xf32>
    %34 = vector.extract %33[0, 0, 0] : f32 from vector<1x1x1xf32>
    %c0_13 = arith.constant 0 : index
    %c0_14 = arith.constant 0 : index
    %35 = vector.load %arg3[%c0_13, %c0_14] : memref<2x256xf32, #tpu.memory_space<vmem>>, vector<2x256xf32>
    %36 = vector.extract_strided_slice %35 {offsets = [0, 0], sizes = [1, 256], strides = [1, 1]} : vector<2x256xf32> to vector<1x256xf32>
    %37 = vector.extract_strided_slice %35 {offsets = [1, 0], sizes = [1, 256], strides = [1, 1]} : vector<2x256xf32> to vector<1x256xf32>
    %38 = arith.maximumf %36, %37 : vector<1x256xf32>
    %39 = arith.subf %36, %37 : vector<1x256xf32>
    %40 = math.absf %39 : vector<1x256xf32>
    %cst_15 = arith.constant 0.000000e+00 : f32
    %41 = vector.broadcast %cst_15 : f32 to vector<1x256xf32>
    %42 = arith.subf %41, %40 : vector<1x256xf32>
    %43 = math.exp %42 : vector<1x256xf32>
    %cst_16 = arith.constant 1.000000e+00 : f32
    %44 = vector.broadcast %cst_16 : f32 to vector<1x256xf32>
    %45 = arith.addf %44, %43 : vector<1x256xf32>
    %46 = math.log %45 : vector<1x256xf32>
    %47 = arith.addf %38, %46 : vector<1x256xf32>
    %c1_i32 = arith.constant 1 : i32
    %48 = vector.broadcast %c1_i32 : i32 to vector<1x256xi32>
    %49 = arith.cmpi eq, %26, %48 : vector<1x256xi32>
    %50 = arith.select %49, %37, %36 : vector<1x256xi1>, vector<1x256xf32>
    %c-1_i32 = arith.constant -1 : i32
    %51 = vector.broadcast %c-1_i32 : i32 to vector<1x256xi32>
    %52 = arith.cmpi ne, %26, %51 : vector<1x256xi32>
    %53 = arith.extui %52 : vector<1x256xi1> to vector<1x256xi32>
    %54 = arith.sitofp %53 : vector<1x256xi32> to vector<1x256xf32>
    %55 = arith.subf %47, %50 : vector<1x256xf32>
    %56 = arith.mulf %55, %54 : vector<1x256xf32>
    %57 = vector.shape_cast %56 : vector<1x256xf32> to vector<1x1x256xf32>
    %cst_17 = arith.constant dense<0.000000e+00> : vector<1xf32>
    %58 = vector.multi_reduction <add>, %57, %cst_17 [1, 2] : vector<1x1x256xf32> to vector<1xf32>
    %59 = vector.shape_cast %58 : vector<1xf32> to vector<1x1x1xf32>
    %60 = vector.extract %59[0, 0, 0] : f32 from vector<1x1x1xf32>
    %61 = vector.shape_cast %54 : vector<1x256xf32> to vector<1x1x256xf32>
    %cst_18 = arith.constant dense<0.000000e+00> : vector<1xf32>
    %62 = vector.multi_reduction <add>, %61, %cst_18 [1, 2] : vector<1x1x256xf32> to vector<1xf32>
    %63 = vector.shape_cast %62 : vector<1xf32> to vector<1x1x1xf32>
    %64 = vector.extract %63[0, 0, 0] : f32 from vector<1x1x1xf32>
    %c0_19 = arith.constant 0 : index
    %c0_20 = arith.constant 0 : index
    %65 = vector.load %arg9[%c0_19, %c0_20] : memref<1x32xi32, #tpu.memory_space<vmem>>, vector<1x32xi32>
    %c0_i32_21 = arith.constant 0 : i32
    %66 = vector.broadcast %c0_i32_21 : i32 to vector<1x32xi32>
    %67 = arith.cmpi eq, %65, %66 : vector<1x32xi32>
    %c0_22 = arith.constant 0 : index
    %c0_23 = arith.constant 0 : index
    %c0_24 = arith.constant 0 : index
    %68 = vector.load %arg5[%c0_22, %c0_23, %c0_24] : memref<4x4x32xf32, #tpu.memory_space<vmem>>, vector<1x4x32xf32>
    %69 = vector.shape_cast %68 : vector<1x4x32xf32> to vector<4x32xf32>
    %cst_25 = arith.constant 0.000000e+00 : f32
    %70 = vector.shape_cast %67 : vector<1x32xi1> to vector<1x32xi1>
    %71 = vector.broadcast %70 : vector<1x32xi1> to vector<4x32xi1>
    %72 = vector.broadcast %cst_25 : f32 to vector<4x32xf32>
    %73 = arith.select %71, %69, %72 : vector<4x32xi1>, vector<4x32xf32>
    %c1_i32_26 = arith.constant 1 : i32
    %74 = vector.broadcast %c1_i32_26 : i32 to vector<1x32xi32>
    %75 = arith.cmpi eq, %65, %74 : vector<1x32xi32>
    %c1 = arith.constant 1 : index
    %c0_27 = arith.constant 0 : index
    %c0_28 = arith.constant 0 : index
    %76 = vector.load %arg5[%c1, %c0_27, %c0_28] : memref<4x4x32xf32, #tpu.memory_space<vmem>>, vector<1x4x32xf32>
    %77 = vector.shape_cast %76 : vector<1x4x32xf32> to vector<4x32xf32>
    %cst_29 = arith.constant 0.000000e+00 : f32
    %78 = vector.shape_cast %75 : vector<1x32xi1> to vector<1x32xi1>
    %79 = vector.broadcast %78 : vector<1x32xi1> to vector<4x32xi1>
    %80 = vector.broadcast %cst_29 : f32 to vector<4x32xf32>
    %81 = arith.select %79, %77, %80 : vector<4x32xi1>, vector<4x32xf32>
    %82 = arith.addf %73, %81 : vector<4x32xf32>
    %c2_i32 = arith.constant 2 : i32
    %83 = vector.broadcast %c2_i32 : i32 to vector<1x32xi32>
    %84 = arith.cmpi eq, %65, %83 : vector<1x32xi32>
    %c2 = arith.constant 2 : index
    %c0_30 = arith.constant 0 : index
    %c0_31 = arith.constant 0 : index
    %85 = vector.load %arg5[%c2, %c0_30, %c0_31] : memref<4x4x32xf32, #tpu.memory_space<vmem>>, vector<1x4x32xf32>
    %86 = vector.shape_cast %85 : vector<1x4x32xf32> to vector<4x32xf32>
    %cst_32 = arith.constant 0.000000e+00 : f32
    %87 = vector.shape_cast %84 : vector<1x32xi1> to vector<1x32xi1>
    %88 = vector.broadcast %87 : vector<1x32xi1> to vector<4x32xi1>
    %89 = vector.broadcast %cst_32 : f32 to vector<4x32xf32>
    %90 = arith.select %88, %86, %89 : vector<4x32xi1>, vector<4x32xf32>
    %91 = arith.addf %82, %90 : vector<4x32xf32>
    %c3_i32 = arith.constant 3 : i32
    %92 = vector.broadcast %c3_i32 : i32 to vector<1x32xi32>
    %93 = arith.cmpi eq, %65, %92 : vector<1x32xi32>
    %c3 = arith.constant 3 : index
    %c0_33 = arith.constant 0 : index
    %c0_34 = arith.constant 0 : index
    %94 = vector.load %arg5[%c3, %c0_33, %c0_34] : memref<4x4x32xf32, #tpu.memory_space<vmem>>, vector<1x4x32xf32>
    %95 = vector.shape_cast %94 : vector<1x4x32xf32> to vector<4x32xf32>
    %cst_35 = arith.constant 0.000000e+00 : f32
    %96 = vector.shape_cast %93 : vector<1x32xi1> to vector<1x32xi1>
    %97 = vector.broadcast %96 : vector<1x32xi1> to vector<4x32xi1>
    %98 = vector.broadcast %cst_35 : f32 to vector<4x32xf32>
    %99 = arith.select %97, %95, %98 : vector<4x32xi1>, vector<4x32xf32>
    %100 = arith.addf %91, %99 : vector<4x32xf32>
    %c0_36 = arith.constant 0 : index
    %c0_37 = arith.constant 0 : index
    %101 = vector.load %arg6[%c0_36, %c0_37] : memref<4x32xf32, #tpu.memory_space<vmem>>, vector<4x32xf32>
    %c0_38 = arith.constant 0 : index
    %c0_39 = arith.constant 0 : index
    %102 = vector.load %arg7[%c0_38, %c0_39] : memref<4x32xf32, #tpu.memory_space<vmem>>, vector<4x32xf32>
    %103 = arith.subf %100, %101 : vector<4x32xf32>
    %104 = arith.mulf %103, %102 : vector<4x32xf32>
    %105 = math.absf %104 : vector<4x32xf32>
    %cst_40 = arith.constant 1.000000e+00 : f32
    %106 = vector.broadcast %cst_40 : f32 to vector<4x32xf32>
    %107 = arith.cmpf olt, %105, %106 : vector<4x32xf32>
    %108 = arith.extui %107 : vector<4x32xi1> to vector<4x32xi32>
    %109 = arith.sitofp %108 : vector<4x32xi32> to vector<4x32xf32>
    %cst_41 = arith.constant 1.000000e+00 : f32
    %110 = vector.broadcast %cst_41 : f32 to vector<4x32xf32>
    %111 = arith.mulf %109, %110 : vector<4x32xf32>
    %112 = arith.mulf %111, %105 : vector<4x32xf32>
    %113 = arith.mulf %112, %105 : vector<4x32xf32>
    %cst_42 = arith.constant 5.000000e-01 : f32
    %114 = vector.broadcast %cst_42 : f32 to vector<4x32xf32>
    %115 = arith.mulf %113, %114 : vector<4x32xf32>
    %cst_43 = arith.constant 1.000000e+00 : f32
    %116 = vector.broadcast %cst_43 : f32 to vector<4x32xf32>
    %117 = arith.subf %116, %109 : vector<4x32xf32>
    %cst_44 = arith.constant 5.000000e-01 : f32
    %118 = vector.broadcast %cst_44 : f32 to vector<4x32xf32>
    %119 = arith.subf %105, %118 : vector<4x32xf32>
    %120 = arith.mulf %117, %119 : vector<4x32xf32>
    %121 = arith.addf %115, %120 : vector<4x32xf32>
    %122 = vector.shape_cast %121 : vector<4x32xf32> to vector<1x4x32xf32>
    %cst_45 = arith.constant dense<0.000000e+00> : vector<1xf32>
    %123 = vector.multi_reduction <add>, %122, %cst_45 [1, 2] : vector<1x4x32xf32> to vector<1xf32>
    %124 = vector.shape_cast %123 : vector<1xf32> to vector<1x1x1xf32>
    %125 = vector.extract %124[0, 0, 0] : f32 from vector<1x1x1xf32>
    %c0_i32_46 = arith.constant 0 : i32
    %126 = vector.broadcast %c0_i32_46 : i32 to vector<1x32xi32>
    %127 = arith.cmpi sge, %65, %126 : vector<1x32xi32>
    %128 = arith.extui %127 : vector<1x32xi1> to vector<1x32xi32>
    %129 = arith.sitofp %128 : vector<1x32xi32> to vector<1x32xf32>
    %130 = vector.shape_cast %129 : vector<1x32xf32> to vector<1x1x32xf32>
    %cst_47 = arith.constant dense<0.000000e+00> : vector<1xf32>
    %131 = vector.multi_reduction <add>, %130, %cst_47 [1, 2] : vector<1x1x32xf32> to vector<1xf32>
    %132 = vector.shape_cast %131 : vector<1xf32> to vector<1x1x1xf32>
    %133 = vector.extract %132[0, 0, 0] : f32 from vector<1x1x1xf32>
    %c0_48 = arith.constant 0 : index
    %c0_49 = arith.constant 0 : index
    %134 = vector.load %arg8[%c0_48, %c0_49] : memref<4x32xf32, #tpu.memory_space<vmem>>, vector<4x32xf32>
    %135 = vector.extract_strided_slice %134 {offsets = [0, 0], sizes = [1, 32], strides = [1, 1]} : vector<4x32xf32> to vector<1x32xf32>
    %136 = vector.extract_strided_slice %134 {offsets = [1, 0], sizes = [1, 32], strides = [1, 1]} : vector<4x32xf32> to vector<1x32xf32>
    %137 = vector.extract_strided_slice %134 {offsets = [2, 0], sizes = [1, 32], strides = [1, 1]} : vector<4x32xf32> to vector<1x32xf32>
    %138 = vector.extract_strided_slice %134 {offsets = [3, 0], sizes = [1, 32], strides = [1, 1]} : vector<4x32xf32> to vector<1x32xf32>
    %139 = arith.maximumf %135, %136 : vector<1x32xf32>
    %140 = arith.maximumf %139, %137 : vector<1x32xf32>
    %141 = arith.maximumf %140, %138 : vector<1x32xf32>
    %142 = arith.subf %135, %141 : vector<1x32xf32>
    %143 = math.exp %142 : vector<1x32xf32>
    %144 = arith.subf %136, %141 : vector<1x32xf32>
    %145 = math.exp %144 : vector<1x32xf32>
    %146 = arith.addf %143, %145 : vector<1x32xf32>
    %147 = arith.subf %137, %141 : vector<1x32xf32>
    %148 = math.exp %147 : vector<1x32xf32>
    %149 = arith.addf %146, %148 : vector<1x32xf32>
    %150 = arith.subf %138, %141 : vector<1x32xf32>
    %151 = math.exp %150 : vector<1x32xf32>
    %152 = arith.addf %149, %151 : vector<1x32xf32>
    %153 = math.log %152 : vector<1x32xf32>
    %154 = arith.addf %141, %153 : vector<1x32xf32>
    %c0_i32_50 = arith.constant 0 : i32
    %155 = vector.broadcast %c0_i32_50 : i32 to vector<1x32xi32>
    %156 = arith.cmpi eq, %65, %155 : vector<1x32xi32>
    %cst_51 = arith.constant 0.000000e+00 : f32
    %157 = vector.broadcast %cst_51 : f32 to vector<1x32xf32>
    %158 = arith.select %156, %135, %157 : vector<1x32xi1>, vector<1x32xf32>
    %c1_i32_52 = arith.constant 1 : i32
    %159 = vector.broadcast %c1_i32_52 : i32 to vector<1x32xi32>
    %160 = arith.cmpi eq, %65, %159 : vector<1x32xi32>
    %cst_53 = arith.constant 0.000000e+00 : f32
    %161 = vector.broadcast %cst_53 : f32 to vector<1x32xf32>
    %162 = arith.select %160, %136, %161 : vector<1x32xi1>, vector<1x32xf32>
    %163 = arith.addf %158, %162 : vector<1x32xf32>
    %c2_i32_54 = arith.constant 2 : i32
    %164 = vector.broadcast %c2_i32_54 : i32 to vector<1x32xi32>
    %165 = arith.cmpi eq, %65, %164 : vector<1x32xi32>
    %cst_55 = arith.constant 0.000000e+00 : f32
    %166 = vector.broadcast %cst_55 : f32 to vector<1x32xf32>
    %167 = arith.select %165, %137, %166 : vector<1x32xi1>, vector<1x32xf32>
    %168 = arith.addf %163, %167 : vector<1x32xf32>
    %c3_i32_56 = arith.constant 3 : i32
    %169 = vector.broadcast %c3_i32_56 : i32 to vector<1x32xi32>
    %170 = arith.cmpi eq, %65, %169 : vector<1x32xi32>
    %cst_57 = arith.constant 0.000000e+00 : f32
    %171 = vector.broadcast %cst_57 : f32 to vector<1x32xf32>
    %172 = arith.select %170, %138, %171 : vector<1x32xi1>, vector<1x32xf32>
    %173 = arith.addf %168, %172 : vector<1x32xf32>
    %c-1_i32_58 = arith.constant -1 : i32
    %174 = vector.broadcast %c-1_i32_58 : i32 to vector<1x32xi32>
    %175 = arith.cmpi ne, %65, %174 : vector<1x32xi32>
    %176 = arith.extui %175 : vector<1x32xi1> to vector<1x32xi32>
    %177 = arith.sitofp %176 : vector<1x32xi32> to vector<1x32xf32>
    %178 = arith.subf %154, %173 : vector<1x32xf32>
    %179 = arith.mulf %178, %177 : vector<1x32xf32>
    %180 = vector.shape_cast %179 : vector<1x32xf32> to vector<1x1x32xf32>
    %cst_59 = arith.constant dense<0.000000e+00> : vector<1xf32>
    %181 = vector.multi_reduction <add>, %180, %cst_59 [1, 2] : vector<1x1x32xf32> to vector<1xf32>
    %182 = vector.shape_cast %181 : vector<1xf32> to vector<1x1x1xf32>
    %183 = vector.extract %182[0, 0, 0] : f32 from vector<1x1x1xf32>
    %184 = vector.shape_cast %177 : vector<1x32xf32> to vector<1x1x32xf32>
    %cst_60 = arith.constant dense<0.000000e+00> : vector<1xf32>
    %185 = vector.multi_reduction <add>, %184, %cst_60 [1, 2] : vector<1x1x32xf32> to vector<1xf32>
    %186 = vector.shape_cast %185 : vector<1xf32> to vector<1x1x1xf32>
    %187 = vector.extract %186[0, 0, 0] : f32 from vector<1x1x1xf32>
    %188 = arith.divf %25, %34 : f32
    %cst_61 = arith.constant 1.000000e+00 : f32
    %189 = arith.mulf %188, %cst_61 : f32
    %190 = arith.divf %60, %64 : f32
    %191 = arith.divf %125, %133 : f32
    %cst_62 = arith.constant 1.000000e+00 : f32
    %192 = arith.mulf %191, %cst_62 : f32
    %193 = arith.divf %183, %187 : f32
    %194 = arith.addf %189, %190 : f32
    %195 = arith.addf %194, %192 : f32
    %196 = arith.addf %195, %193 : f32
    %c0_63 = arith.constant 0 : index
    %197 = memref.load %arg10[%c0_63] : memref<5xf32, #tpu.memory_space<smem>>
    memref.store %189, %arg10[%c0_63] : memref<5xf32, #tpu.memory_space<smem>>
    %c1_64 = arith.constant 1 : index
    %198 = memref.load %arg10[%c1_64] : memref<5xf32, #tpu.memory_space<smem>>
    memref.store %190, %arg10[%c1_64] : memref<5xf32, #tpu.memory_space<smem>>
    %c2_65 = arith.constant 2 : index
    %199 = memref.load %arg10[%c2_65] : memref<5xf32, #tpu.memory_space<smem>>
    memref.store %192, %arg10[%c2_65] : memref<5xf32, #tpu.memory_space<smem>>
    %c3_66 = arith.constant 3 : index
    %200 = memref.load %arg10[%c3_66] : memref<5xf32, #tpu.memory_space<smem>>
    memref.store %193, %arg10[%c3_66] : memref<5xf32, #tpu.memory_space<smem>>
    %c4 = arith.constant 4 : index
    %201 = memref.load %arg10[%c4] : memref<5xf32, #tpu.memory_space<smem>>
    memref.store %196, %arg10[%c4] : memref<5xf32, #tpu.memory_space<smem>>
    return
  }
}

</mosaic_0001>

<llo_original>
// kernel: trainer_forward.2
$region0: #{trainer_forward.2}
  #allocation0 [shape = 'u32[]', space=smem, size = 0x4, offset = 0x4, fixed_abs, tag = 'smem constant byte address 0x4 - core index']
  #allocation1 [shape = 'u32[144,128]{1,0:T(1,128)}', space=vmem, size = 0x12000, scoped, tag = 'internal scratch']
  %s0 = inlined_call_operand.vmem [shape: f32[8,128], index: 0, kind: input, shape index: {}]
  %s1 = inlined_call_operand.vmem [shape: f32[8,128], index: 1, kind: input, shape index: {}]
  %s2 = inlined_call_operand.vmem [shape: f32[8,128], index: 2, kind: input, shape index: {}]
  %s3 = inlined_call_operand.vmem [shape: s32[1,256], index: 3, kind: input, shape index: {}]
  %s4 = inlined_call_operand.vmem [shape: f32[32,4,4], index: 4, kind: input, shape index: {}]
  %s5 = inlined_call_operand.vmem [shape: f32[32,4], index: 5, kind: input, shape index: {}]
  %s6 = inlined_call_operand.vmem [shape: f32[32,4], index: 6, kind: input, shape index: {}]
  %s7 = inlined_call_operand.vmem [shape: f32[256,2], index: 7, kind: input, shape index: {}]
  %s8 = inlined_call_operand.vmem [shape: f32[32], index: 8, kind: input, shape index: {}]
  %s9 = inlined_call_operand.vmem [shape: s32[32], index: 9, kind: input, shape index: {}]
  %s10 = inlined_call_operand.vmem [shape: f32[5], index: 10, kind: output, shape index: {}]
  %s11 = sld [smem:[#allocation0]]
  $region50: #{trainer_forward.2} parent=0
    _
  %s13 = ssub.s32 1, %s11
  %s14 = scalar_select 0, %s13, %s11
  $region1: #{trainer_forward.2} parent=0
    #allocation2 [shape = 'u8[512]{0}', space=smem, size = 0x200, scoped, tag = 'output window, operand 0, single buffered']
    #allocation3 [shape = 's32[1]{0}', space=sflag, size = 0x4, scoped, tag = 'scoped memory for trainer_forward.2']
    #allocation4 [shape = 'u8[2048]{0}', space=vmem, size = 0x800, dematerialized = true, scoped, tag = 'FusionAdapter Buffer %fusion.4 = f32[2,256]{1,0:T(2,128)} fusion(%param_7.6), kind=kLoop, calls=%fused_computation.4.clone, metadata={op_name="jit(trainer_forward)/transpose" stack_frame_id=12}']
    #allocation5 [shape = 'u8[8192]{0}', space=vmem, size = 0x2000, dematerialized = true, scoped, tag = 'FusionAdapter Buffer %fusion.1 = f32[4,4,32]{2,1,0:T(4,128)} fusion(%param_4.3), kind=kLoop, calls=%fused_computation.1.clone, metadata={op_name="jit(trainer_forward)/transpose" stack_frame_id=14}']
    #allocation6 [shape = 'u8[2048]{0}', space=vmem, size = 0x800, dematerialized = true, scoped, tag = 'FusionAdapter Buffer %fusion.3 = f32[4,32]{1,0:T(4,128)} fusion(%param_6.5), kind=kLoop, calls=%fused_computation.3.clone, metadata={op_name="jit(trainer_forward)/transpose" stack_frame_id=15}']
    #allocation7 [shape = 'u8[2048]{0}', space=vmem, size = 0x800, dematerialized = true, scoped, tag = 'FusionAdapter Buffer %fusion.5 = f32[4,32]{1,0:T(4,128)} fusion(%param_8.6), kind=kLoop, calls=%fused_computation.7.clone, metadata={op_name="jit(trainer_forward)/broadcast_in_dim" stack_frame_id=17}']
    #allocation8 [shape = 'u8[2048]{0}', space=vmem, size = 0x800, dematerialized = true, scoped, tag = 'FusionAdapter Buffer %fusion.2 = f32[4,32]{1,0:T(4,128)} fusion(%param_5.5), kind=kLoop, calls=%fused_computation.2.clone, metadata={op_name="jit(trainer_forward)/transpose" stack_frame_id=18}']
    #allocation9 [shape = 'u8[512]{0}', space=vmem, size = 0x400, dematerialized = true, scoped, tag = 'FusionAdapter Buffer %fusion.6 = s32[1,32]{1,0:T(1,128)} fusion(%param_9.6), kind=kLoop, calls=%fused_computation.8.clone, metadata={op_name="jit(trainer_forward)/reshape" stack_frame_id=13}']
    %15 = vsyncpa [#allocation3], 0
    // Predicated region
    $region2: #{trainer_forward.2} parent=1 // pred_check
      _
    $region3: #{trainer_forward.2} parent=1 // pred_check_branch
      %17 = sbr.rel (0) target = $region5
    $region4: #{trainer_forward.2} parent=1 // pred_region
      _
    $region5: #{trainer_forward.2} parent=1 // pred_fallthru
      _
    // Predicated region
    $region6: #{trainer_forward.2} parent=1 // pred_check
      _
    $region7: #{trainer_forward.2} parent=1 // pred_check_branch
      %19 = sbr.rel (0) target = $region9
    $region8: #{trainer_forward.2} parent=1 // pred_region
      _
    $region9: #{trainer_forward.2} parent=1 // pred_fallthru
      _
    // Predicated region
    $region10: #{trainer_forward.2} parent=1 // pred_check
      _
    $region11: #{trainer_forward.2} parent=1 // pred_check_branch
      %21 = sbr.rel (0) target = $region13
    $region12: #{trainer_forward.2} parent=1 // pred_region
      _
    $region13: #{trainer_forward.2} parent=1 // pred_fallthru
      _
    // Predicated region
    $region14: #{trainer_forward.2} parent=1 // pred_check
      _
    $region15: #{trainer_forward.2} parent=1 // pred_check_branch
      %23 = sbr.rel (0) target = $region17
    $region16: #{trainer_forward.2} parent=1 // pred_region
      _
    $region17: #{trainer_forward.2} parent=1 // pred_fallthru
      _
    // Predicated region
    $region18: #{trainer_forward.2} parent=1 // pred_check
      _
    $region19: #{trainer_forward.2} parent=1 // pred_check_branch
      %25 = sbr.rel (0) target = $region21
    $region20: #{trainer_forward.2} parent=1 // pred_region
      _
    $region21: #{trainer_forward.2} parent=1 // pred_fallthru
      _
    // Predicated region
    $region22: #{trainer_forward.2} parent=1 // pred_check
      _
    $region23: #{trainer_forward.2} parent=1 // pred_check_branch
      %27 = sbr.rel (0) target = $region25
    $region24: #{trainer_forward.2} parent=1 // pred_region
      _
    $region25: #{trainer_forward.2} parent=1 // pred_fallthru
      _
    // Predicated region
    $region26: #{trainer_forward.2} parent=1 // pred_check
      _
    $region27: #{trainer_forward.2} parent=1 // pred_check_branch
      %29 = sbr.rel (0) target = $region29
    $region28: #{trainer_forward.2} parent=1 // pred_region
      _
    $region29: #{trainer_forward.2} parent=1 // pred_fallthru
      _
    // Predicated region
    $region30: #{trainer_forward.2} parent=1 // pred_check
      _
    $region31: #{trainer_forward.2} parent=1 // pred_check_branch
      %31 = sbr.rel (0) target = $region33
    $region32: #{trainer_forward.2} parent=1 // pred_region
      _
    $region33: #{trainer_forward.2} parent=1 // pred_fallthru
      _
    // Predicated region
    $region34: #{trainer_forward.2} parent=1 // pred_check
      _
    $region35: #{trainer_forward.2} parent=1 // pred_check_branch
      %33 = sbr.rel (0) target = $region37
    $region36: #{trainer_forward.2} parent=1 // pred_region
      _
    $region37: #{trainer_forward.2} parent=1 // pred_fallthru
      _
    // Predicated region
    $region38: #{trainer_forward.2} parent=1 // pred_check
      _
    $region39: #{trainer_forward.2} parent=1 // pred_check_branch
      %35 = sbr.rel (0) target = $region41
    $region40: #{trainer_forward.2} parent=1 // pred_region
      _
    $region41: #{trainer_forward.2} parent=1 // pred_fallthru
      _
    %v36 = vld [vmem:[%s7] sm:$0x3]
    %38 = vst [vmem:[#allocation4] sm:$0x3] %v36
    %s39 = scalar_lea.vmem %s7, 2
    %v40 = vld [vmem:[%s39] sm:$0x3]
    %s41 = scalar_lea.vmem [#allocation4], 2
    %43 = vst [vmem:[%s41] sm:$0x3] %v40
    %v44 = vld [vmem:[%s4] sm:$0xf]
    %46 = vst [vmem:[#allocation5] sm:$0xf] %v44
    %s47 = scalar_lea.vmem %s4, 4
    %v48 = vld [vmem:[%s47] sm:$0xf]
    %s49 = scalar_lea.vmem [#allocation5], 4
    %51 = vst [vmem:[%s49] sm:$0xf] %v48
    %s52 = scalar_lea.vmem %s4, 8
    %v53 = vld [vmem:[%s52] sm:$0xf]
    %s54 = scalar_lea.vmem [#allocation5], 8
    %56 = vst [vmem:[%s54] sm:$0xf] %v53
    %s57 = scalar_lea.vmem %s4, 12
    %v58 = vld [vmem:[%s57] sm:$0xf]
    %s59 = scalar_lea.vmem [#allocation5], 12
    %61 = vst [vmem:[%s59] sm:$0xf] %v58
    %v62 = vld [vmem:[%s6] sm:$0xf]
    %64 = vst [vmem:[#allocation6] sm:$0xf] %v62
    %v65 = vld [vmem:[%s8] ss:$0 sm:$0xff]
    %67 = vst [vmem:[#allocation7] sm:$0xf] %v65
    %v68 = vld [vmem:[%s5] sm:$0xf]
    %70 = vst [vmem:[#allocation8] sm:$0xf] %v68
    %v71 = vld [vmem:[%s9] sm:$0x1]
    %73 = vst [vmem:[#allocation9] sm:$0x1] %v71
    %v74 = vld [vmem:[%s0] sm:$0xff]
    %v75 = vld [vmem:[%s1] sm:$0xff]
    %v76 = vld [vmem:[%s2] sm:$0xff]
    %v77 = vsub.f32 %v74, %v75
    %v78 = vmul.f32 %v77, %v76
    %v79 = vand.u32 2147483647, %v78
    %vm80 = vcmp.lt.f32.partialorder %v79, 0.11111111
    %v81 = vsel %vm80, 1, 0
    %v82 = vcvt.s32.f32 %v81
    %v83 = vmul.f32 %v82, 9.0
    %v84 = vmul.f32 %v83, %v79
    %v85 = vmul.f32 %v84, %v79
    %v86 = vmul.f32 %v85, 0.5
    %v87 = vsub.f32 1.0, %v82
    %v88 = vsub.f32 %v79, 0.055555556
    %v89 = vmul.f32 %v87, %v88
    %v90 = vadd.f32 %v86, %v89
    %91 = vadd.xlane.f32.xlu0 %v90
    %v92 = vpop.xlane.xlu0 %91
    %v93 = vrot.slane %v92, 4
    %v94 = vadd.f32 %v92, %v93
    %v95 = vrot.slane %v94, 2
    %v96 = vadd.f32 %v94, %v95
    %v97 = vrot.slane %v96, 1
    %v98 = vadd.f32 %v96, %v97
    %s99 = vtos %v98
    %v100 = vld [vmem:[%s3] sm:$0x3]
    %vm101 = vcmp.ge.s32.totalorder %v100, 0
    %v102 = vsel %vm101, 1, 0
    %v103 = vcvt.s32.f32 %v102
    %v105 = vlaneseq
    %v106 = vshrl.u32 %v105, 7
    %v107 = vsub.s32 0, %v106
    %v108 = vrot.slane %v103, %v107
    %v109 = vlaneseq
    %v110 = vshrl.u32 %v109, 7
    %v111 = vsub.s32 1, %v110
    %v112 = vrot.slane %v103, %v111
    %vm115 = vcmask 1040384
    %v116 = vsel %vm115, %v108, 0.0
    %v117 = vsel %vm115, %v112, 0.0
    %v118 = vadd.f32 %v116, %v117
    %119 = vadd.xlane.f32.xlu0 %v118
    %v120 = vpop.xlane.xlu0 %119
    %v121 = vrot.slane %v120, 4
    %v122 = vadd.f32 %v120, %v121
    %v123 = vrot.slane %v122, 2
    %v124 = vadd.f32 %v122, %v123
    %v125 = vrot.slane %v124, 1
    %v126 = vadd.f32 %v124, %v125
    %s127 = vtos %v126
    %v128 = vld [vmem:[#allocation4] sm:$0xf]
    %v130 = vrot.slane %v128, 7
    %v131 = vrot.slane %v130, 2
    %v133 = vmax.f32 %v128, %v131
    %v134 = vsub.f32 %v128, %v131
    %v135 = vand.u32 2147483647, %v134
    %v136 = vsub.f32 0.0, %v135
    %v137 = vmul.f32 %v136, 1.442695
    %v138 = vpow.pop %v137
    %v139 = vadd.f32 %v138, 1.0
    %v140 = vlog2.pop %v139
    %v141 = vmul.f32 %v140, 0.6931472
    %v142 = vadd.f32 %v133, %v141
    %vm143 = vcmp.eq.s32.totalorder %v100, 1
    %v145 = vunpack.c.l.s4 1966171168
    %v146 = vunpack.c.0.s8 %v145
    %v147 = vlaneseq
    %v148 = vshrl.u32 %v147, 7
    %v149 = vsub.s32 %v146, %v148
    %v150 = vrot.slane %v128, %v149
    %v151 = vcombine.high %v150, %v150
    %v154 = vsel %vm143, %v151, %v150
    %vm155 = vcmp.ne.s32.totalorder %v100, 4294967295
    %v156 = vsel %vm155, 1, 0
    %v157 = vcvt.s32.f32 %v156
    %v160 = vunpack.c.l.s4 857870592
    %v161 = vunpack.c.0.s8 %v160
    %v162 = vlaneseq
    %v163 = vshrl.u32 %v162, 7
    %v164 = vsub.s32 %v161, %v163
    %v165 = vrot.slane %v154, %v164
    %v167 = vsub.f32 %v142, %v165
    %v170 = vunpack.c.l.s4 857870592
    %v171 = vunpack.c.0.s8 %v170
    %v172 = vlaneseq
    %v173 = vshrl.u32 %v172, 7
    %v174 = vsub.s32 %v171, %v173
    %v175 = vrot.slane %v157, %v174
    %v177 = vmul.f32 %v167, %v175
    %v179 = vlaneseq
    %v180 = vshrl.u32 %v179, 7
    %v181 = vsub.s32 0, %v180
    %v182 = vrot.slane %v177, %v181
    %v183 = vlaneseq
    %v184 = vshrl.u32 %v183, 7
    %v185 = vsub.s32 2, %v184
    %v186 = vrot.slane %v177, %v185
    %v189 = vsel %vm115, %v182, 0.0
    %v190 = vsel %vm115, %v186, 0.0
    %v191 = vadd.f32 %v189, %v190
    %192 = vadd.xlane.f32.xlu0 %v191
    %v193 = vpop.xlane.xlu0 %192
    %v194 = vrot.slane %v193, 4
    %v195 = vadd.f32 %v193, %v194
    %v196 = vrot.slane %v195, 2
    %v197 = vadd.f32 %v195, %v196
    %v198 = vrot.slane %v197, 1
    %v199 = vadd.f32 %v197, %v198
    %s200 = vtos %v199
    %v201 = vlaneseq
    %v202 = vshrl.u32 %v201, 7
    %v203 = vsub.s32 0, %v202
    %v204 = vrot.slane %v157, %v203
    %v205 = vlaneseq
    %v206 = vshrl.u32 %v205, 7
    %v207 = vsub.s32 1, %v206
    %v208 = vrot.slane %v157, %v207
    %v211 = vsel %vm115, %v204, 0.0
    %v212 = vsel %vm115, %v208, 0.0
    %v213 = vadd.f32 %v211, %v212
    %214 = vadd.xlane.f32.xlu0 %v213
    %v215 = vpop.xlane.xlu0 %214
    %v216 = vrot.slane %v215, 4
    %v217 = vadd.f32 %v215, %v216
    %v218 = vrot.slane %v217, 2
    %v219 = vadd.f32 %v217, %v218
    %v220 = vrot.slane %v219, 1
    %v221 = vadd.f32 %v219, %v220
    %s222 = vtos %v221
    %v223 = vld [vmem:[#allocation9] sm:$0x1]
    %vm224 = vcmp.eq.s32.totalorder %v223, 0
    %v225 = vld [vmem:[#allocation5] sm:$0xf]
    %v226 = vsel %vm224, 1, 0
    %v227 = vlaneseq
    %v228 = vshrl.u32 %v227, 7
    %v229 = vsub.s32 0, %v228
    %v230 = vrot.slane %v226, %v229
    %vm231 = vcmp.eq.s32.totalorder %v230, 1
    %v232 = vsel %vm231, %v225, 0.0
    %vm233 = vcmp.eq.s32.totalorder %v223, 1
    %s234 = scalar_lea.vmem [#allocation5], 4
    %v235 = vld [vmem:[%s234] sm:$0xf]
    %v236 = vsel %vm233, 1, 0
    %v237 = vlaneseq
    %v238 = vshrl.u32 %v237, 7
    %v239 = vsub.s32 0, %v238
    %v240 = vrot.slane %v236, %v239
    %vm241 = vcmp.eq.s32.totalorder %v240, 1
    %v242 = vsel %vm241, %v235, 0.0
    %v243 = vadd.f32 %v232, %v242
    %vm244 = vcmp.eq.s32.totalorder %v223, 2
    %s245 = scalar_lea.vmem [#allocation5], 8
    %v246 = vld [vmem:[%s245] sm:$0xf]
    %v247 = vsel %vm244, 1, 0
    %v248 = vlaneseq
    %v249 = vshrl.u32 %v248, 7
    %v250 = vsub.s32 0, %v249
    %v251 = vrot.slane %v247, %v250
    %vm252 = vcmp.eq.s32.totalorder %v251, 1
    %v253 = vsel %vm252, %v246, 0.0
    %v254 = vadd.f32 %v243, %v253
    %vm255 = vcmp.eq.s32.totalorder %v223, 3
    %s256 = scalar_lea.vmem [#allocation5], 12
    %v257 = vld [vmem:[%s256] sm:$0xf]
    %v258 = vsel %vm255, 1, 0
    %v259 = vlaneseq
    %v260 = vshrl.u32 %v259, 7
    %v261 = vsub.s32 0, %v260
    %v262 = vrot.slane %v258, %v261
    %vm263 = vcmp.eq.s32.totalorder %v262, 1
    %v264 = vsel %vm263, %v257, 0.0
    %v265 = vadd.f32 %v254, %v264
    %v266 = vld [vmem:[#allocation6] sm:$0xf]
    %v267 = vld [vmem:[#allocation7] sm:$0xf]
    %v268 = vsub.f32 %v265, %v266
    %v269 = vmul.f32 %v268, %v267
    %v270 = vand.u32 2147483647, %v269
    %vm271 = vcmp.lt.f32.partialorder %v270, 1.0
    %v272 = vsel %vm271, 1, 0
    %v273 = vcvt.s32.f32 %v272
    %v274 = vmul.f32 %v273, %v270
    %v275 = vmul.f32 %v274, %v270
    %v276 = vmul.f32 %v275, 0.5
    %v277 = vsub.f32 1.0, %v273
    %v278 = vsub.f32 %v270, 0.5
    %v279 = vmul.f32 %v277, %v278
    %v280 = vadd.f32 %v276, %v279
    %vm281 = vcmask 257024
    %v282 = vsel %vm281, %v280, 0.0
    %283 = vadd.xlane.f32.xlu0 %v282
    %v284 = vpop.xlane.xlu0 %283
    %v285 = vrot.slane %v284, 4
    %v286 = vadd.f32 %v284, %v285
    %v287 = vrot.slane %v286, 2
    %v288 = vadd.f32 %v286, %v287
    %v289 = vrot.slane %v288, 1
    %v290 = vadd.f32 %v288, %v289
    %s291 = vtos %v290
    %vm292 = vcmp.ge.s32.totalorder %v223, 0
    %v293 = vsel %vm292, 1, 0
    %v294 = vcvt.s32.f32 %v293
    %vm295 = vcmask 253952
    %v296 = vsel %vm295, %v294, 0.0
    %297 = vadd.xlane.f32.xlu0 %v296
    %v298 = vpop.xlane.xlu0 %297
    %v299 = vrot.slane %v298, 4
    %v300 = vadd.f32 %v298, %v299
    %v301 = vrot.slane %v300, 2
    %v302 = vadd.f32 %v300, %v301
    %v303 = vrot.slane %v302, 1
    %v304 = vadd.f32 %v302, %v303
    %s305 = vtos %v304
    %v306 = vld [vmem:[#allocation8] sm:$0xf]
    %v308 = vrot.slane %v306, 1
    %v310 = vmax.f32 %v306, %v308
    %v311 = vrot.slane %v306, 2
    %v313 = vmax.f32 %v310, %v311
    %v314 = vrot.slane %v306, 3
    %v316 = vmax.f32 %v313, %v314
    %v317 = vsub.f32 %v306, %v316
    %v318 = vmul.f32 %v317, 1.442695
    %v319 = vpow.pop %v318
    %v321 = vrot.slane %v316, 7
    %v323 = vsub.f32 %v306, %v321
    %v324 = vmul.f32 %v323, 1.442695
    %v325 = vpow.pop %v324
    %v327 = vrot.slane %v325, 1
    %v329 = vadd.f32 %v319, %v327
    %v330 = vrot.slane %v316, 6
    %v332 = vsub.f32 %v306, %v330
    %v333 = vmul.f32 %v332, 1.442695
    %v334 = vpow.pop %v333
    %v336 = vrot.slane %v334, 2
    %v338 = vadd.f32 %v329, %v336
    %v339 = vrot.slane %v316, 5
    %v341 = vsub.f32 %v306, %v339
    %v342 = vmul.f32 %v341, 1.442695
    %v343 = vpow.pop %v342
    %v345 = vrot.slane %v343, 3
    %v347 = vadd.f32 %v338, %v345
    %v348 = vlog2.pop %v347
    %v349 = vmul.f32 %v348, 0.6931472
    %v350 = vadd.f32 %v316, %v349
    %v351 = vsel %vm224, %v306, 0.0
    %v353 = vunpack.c.l.s4 1966171168
    %v354 = vunpack.c.0.s8 %v353
    %v355 = vlaneseq
    %v356 = vshrl.u32 %v355, 7
    %v357 = vsub.s32 %v354, %v356
    %v358 = vrot.slane %v306, %v357
    %v359 = vcombine.high %v358, %v358
    %v361 = vunpack.c.l.s4 1966171168
    %v362 = vunpack.c.0.s8 %v361
    %v363 = vlaneseq
    %v364 = vshrl.u32 %v363, 7
    %v365 = vsub.s32 %v362, %v364
    %v366 = vrot.slane %v358, %v365
    %v368 = vunpack.c.l.s4 1966171168
    %v369 = vunpack.c.0.s8 %v368
    %v370 = vlaneseq
    %v371 = vshrl.u32 %v370, 7
    %v372 = vsub.s32 %v369, %v371
    %v373 = vrot.slane %v359, %v372
    %v375 = vsel %vm233, %v373, 0.0
    %v376 = vadd.f32 %v351, %v375
    %v377 = vcombine.high %v366, %v366
    %v379 = vsel %vm244, %v377, 0.0
    %v380 = vadd.f32 %v376, %v379
    %v381 = vcombine.high %v373, %v373
    %v383 = vsel %vm255, %v381, 0.0
    %v384 = vadd.f32 %v380, %v383
    %vm385 = vcmp.ne.s32.totalorder %v223, 4294967295
    %v386 = vsel %vm385, 1, 0
    %v387 = vcvt.s32.f32 %v386
    %v388 = vsub.f32 %v350, %v384
    %v389 = vmul.f32 %v388, %v387
    %v390 = vsel %vm295, %v389, 0.0
    %391 = vadd.xlane.f32.xlu0 %v390
    %v392 = vpop.xlane.xlu0 %391
    %v393 = vrot.slane %v392, 4
    %v394 = vadd.f32 %v392, %v393
    %v395 = vrot.slane %v394, 2
    %v396 = vadd.f32 %v394, %v395
    %v397 = vrot.slane %v396, 1
    %v398 = vadd.f32 %v396, %v397
    %s399 = vtos %v398
    %v400 = vsel %vm295, %v387, 0.0
    %401 = vadd.xlane.f32.xlu0 %v400
    %v402 = vpop.xlane.xlu0 %401
    %v403 = vrot.slane %v402, 4
    %v404 = vadd.f32 %v402, %v403
    %v405 = vrot.slane %v404, 2
    %v406 = vadd.f32 %v404, %v405
    %v407 = vrot.slane %v406, 1
    %v408 = vadd.f32 %v406, %v407
    %s409 = vtos %v408
    %v410 = vstv %s127
    %v411 = vrcp.pop %v410
    %s412 = vtos %v411
    %s413 = smul.f32 %s99, %s412
    %v414 = vstv %s222
    %v415 = vrcp.pop %v414
    %s416 = vtos %v415
    %s417 = smul.f32 %s200, %s416
    %v418 = vstv %s305
    %v419 = vrcp.pop %v418
    %s420 = vtos %v419
    %s421 = smul.f32 %s291, %s420
    %v422 = vstv %s409
    %v423 = vrcp.pop %v422
    %s424 = vtos %v423
    %s425 = smul.f32 %s399, %s424
    %s426 = sadd.f32 %s413, %s417
    %s427 = sadd.f32 %s426, %s421
    %s428 = sadd.f32 %s427, %s425
    %s429 = scalar_lea.smem [#allocation2], 0
    %430 = sst [smem:[%s429]] %s413
    %s431 = scalar_lea.smem [#allocation2], 1
    %432 = sst [smem:[%s431]] %s417
    %s433 = scalar_lea.smem [#allocation2], 2
    %434 = sst [smem:[%s433]] %s421
    %s435 = scalar_lea.smem [#allocation2], 3
    %436 = sst [smem:[%s435]] %s425
    %s437 = scalar_lea.smem [#allocation2], 4
    %438 = sst [smem:[%s437]] %s428
    // Predicated region
    $region42: #{trainer_forward.2} parent=1 // pred_check
      _
    $region43: #{trainer_forward.2} parent=1 // pred_check_branch
      %440 = sbr.rel (0) target = $region45
    $region44: #{trainer_forward.2} parent=1 // pred_region
      %s442 = ssub.s32 16, 16
      %443 = vsyncadd [#allocation3], %s442
      %s445 = sshll.u32 %s10, 4
      %s446 = int_to_ptr.vmem [resolvable:$true] %s445
      %448 = dma.smem_to_vmem [#allocation2], 16, %s446, [#allocation3]
    $region45: #{trainer_forward.2} parent=1 // pred_fallthru
      _
    // Predicated region
    $region46: #{trainer_forward.2} parent=1 // pred_check
      _
    $region47: #{trainer_forward.2} parent=1 // pred_check_branch
      %450 = sbr.rel (0) target = $region49
    $region48: #{trainer_forward.2} parent=1 // pred_region
      %451 = dma.done [#allocation3], 16
    $region49: #{trainer_forward.2} parent=1 // pred_fallthru
      _
    %452 = sfence
    %453 = vsyncpa [#allocation3], 1

</llo_original>
